<compile_context>
chip_gen: v6e
topology: v6e:2x2x1
jax: 0.10.0
libtpu: 0.0.40
codegen_flags: <defaults>
</compile_context>

<pallas_src>
import functools
import math

import jax
import jax.numpy as jnp
from jax import lax
from jax.experimental import pallas as pl
from jax.experimental.pallas import tpu as pltpu


def _sdpa_kernel(q_ref, k_ref, v_ref, *rest, scale, has_mask, return_attn):
    # Per-(batch, head, q-tile) views (leading dims squeezed by the BlockSpec):
    #   q_ref: (TQ, Dk), k_ref: (Lk, Dk), v_ref: (Lk, Dv)
    #   mask_ref (if present): (TQ or 1, Lk or 1) in its stored (narrow) dtype.
    refs = list(rest)
    mask_ref = refs.pop(0) if has_mask else None
    ctx_ref = refs.pop(0)
    attn_ref = refs.pop(0) if return_attn else None

    q = q_ref[...]
    k = k_ref[...]
    v = v_ref[...]

    # Fold 1/sqrt(dk) into Q: scales Lq*Dk elements instead of Lq*Lk scores.
    q = q * jnp.asarray(scale, dtype=q.dtype)

    # scores = (Q * scale) @ K^T, contracting the last dims directly on the MXU
    # (no materialized transpose), f32 accumulation regardless of input dtype.
    scores = lax.dot_general(
        q,
        k,
        dimension_numbers=(((1,), (1,)), ((), ())),
        preferred_element_type=jnp.float32,
    )

    if has_mask:
        # masked_fill_(attn_mask, -1e9): test the narrow dtype directly
        # (no int8->f32 widening pass); broadcast rows/lanes handled by jnp.
        m = mask_ref[...]
        if m.dtype != jnp.bool_:
            m = m != 0
        scores = jnp.where(m, jnp.float32(-1e9), scores)

    # Numerically stable softmax over the key axis, in f32.
    row_max = jnp.max(scores, axis=-1, keepdims=True)
    e = jnp.exp(scores - row_max)
    denom = jnp.sum(e, axis=-1, keepdims=True)
    # One reciprocal per row on the EUP instead of Lk divides per row.
    attn = e * pl.reciprocal(denom, approx=False)

    # context = attn @ V (attn cast to V's dtype so bf16 inputs hit the fast
    # MXU path; accumulation stays f32).
    ctx = jnp.dot(attn.astype(v.dtype), v, preferred_element_type=jnp.float32)

    ctx_ref[...] = ctx.astype(ctx_ref.dtype)
    if return_attn:
        attn_ref[...] = attn.astype(attn_ref.dtype)


def _vmem_limit_bytes():
    """Scoped-VMEM request derived from the chip's physical VMEM."""
    try:
        cap = int(pltpu.get_tpu_info().vmem_capacity_bytes)
    except Exception:
        cap = 64 << 20  # conservative (v7x-sized) fallback
    # ~75% of physical (<=48 MiB on v7x, ~96 MiB on v5e/v6e), capped at 100 MiB.
    return max(32 << 20, min((cap * 3) // 4, 100 << 20))


def _mxu_is_256_wide():
    """v6e / v7x have 256-wide MXUs; v2-v5 are 128-wide (keep TQ=128 there)."""
    try:
        kind = jax.devices()[0].device_kind.lower()
    except Exception:
        return True
    return not any(tag in kind for tag in ("v2", "v3", "v4", "v5"))


def _choose_q_tile(Lq, Lk, Dk, Dv, in_itemsize, out_itemsize, attn_itemsize,
                   mask_itemsize, mask_q_is_bcast, return_attn, vmem_budget):
    # Full Lq for small sequences (one grid step per head). Otherwise prefer a
    # 256-row tile on 256-wide-MXU chips when the Lk-scaled tiles fit the VMEM
    # budget (double-buffered pipeline tiles + live f32 intermediates), else 128.
    if Lq <= 256:
        return Lq
    candidates = (256, 128) if _mxu_is_256_wide() else (128,)
    for tq in candidates:
        mask_rows = 1 if mask_q_is_bcast else tq
        pipelined = 2 * (
            tq * Dk * in_itemsize                       # Q tile
            + Lk * Dk * in_itemsize                     # K
            + Lk * Dv * in_itemsize                     # V
            + mask_rows * Lk * mask_itemsize            # mask tile
            + tq * Dv * out_itemsize                    # context tile
            + (tq * Lk * attn_itemsize if return_attn else 0)
        )
        live_f32 = 3 * tq * Lk * 4                      # scores / exp / attn
        if pipelined + live_f32 <= int(vmem_budget * 0.8):
            return tq
    return 128


def scaled_dot_product_attention(Q, K, V, attn_mask, dk, *,
                                 return_attn=True, attn_dtype=None):
    """Forward pass of ScaledDotProductAttention.

    Q: [B,H,Lq,Dk], K: [B,H,Lk,Dk], V: [B,H,Lk,Dv].
    attn_mask: None or broadcastable to [B,H,Lq,Lk]; True/nonzero => masked.
    Returns (context, attn) if return_attn else context.
    """
    B, H, Lq, Dk = Q.shape
    Lk = K.shape[2]
    Dv = V.shape[3]

    out_dtype = Q.dtype
    attn_dtype = out_dtype if attn_dtype is None else jnp.dtype(attn_dtype)

    has_mask = attn_mask is not None
    if has_mask:
        # Normalize to 4D; broadcast dims are expressed in the BlockSpec
        # index_map so the mask is never materialized to [B,H,Lq,Lk].
        if attn_mask.ndim < 4:
            attn_mask = attn_mask.reshape((1,) * (4 - attn_mask.ndim) + attn_mask.shape)
        mB, mH, mLq, mLk = attn_mask.shape
        for got, want, name in ((mB, B, "batch"), (mH, H, "heads"),
                                (mLq, Lq, "len_q"), (mLk, Lk, "len_k")):
            if got not in (1, want):
                raise ValueError(f"attn_mask {name} dim {got} not broadcastable to {want}")

    vmem_limit = _vmem_limit_bytes()
    tq = _choose_q_tile(
        Lq, Lk, Dk, Dv,
        in_itemsize=Q.dtype.itemsize,
        out_itemsize=jnp.dtype(out_dtype).itemsize,
        attn_itemsize=jnp.dtype(attn_dtype).itemsize,
        mask_itemsize=(attn_mask.dtype.itemsize if has_mask else 0),
        mask_q_is_bcast=(has_mask and mLq == 1),
        return_attn=return_attn,
        vmem_budget=vmem_limit,
    )
    n_q = pl.cdiv(Lq, tq)
    grid = (B, H, n_q)

    # Inputs: Q tile per (b,h,qi); K/V full key range per (b,h), reused across
    # the innermost q axis (block index constant in qi => no re-DMA per q-tile).
    in_specs = [
        pl.BlockSpec((None, None, tq, Dk), lambda b, h, qi: (b, h, qi, 0)),
        pl.BlockSpec((None, None, Lk, Dk), lambda b, h, qi: (b, h, 0, 0)),
        pl.BlockSpec((None, None, Lk, Dv), lambda b, h, qi: (b, h, 0, 0)),
    ]
    operands = [Q, K, V]
    if has_mask:
        b_bcast, h_bcast, q_bcast = (mB == 1), (mH == 1), (mLq == 1)
        mask_blk_q = 1 if q_bcast else tq

        def mask_index_map(b, h, qi, _bb=b_bcast, _hb=h_bcast, _qb=q_bcast):
            return (0 if _bb else b, 0 if _hb else h, 0 if _qb else qi, 0)

        in_specs.append(pl.BlockSpec((None, None, mask_blk_q, mLk), mask_index_map))
        operands.append(attn_mask)

    ctx_spec = pl.BlockSpec((None, None, tq, Dv), lambda b, h, qi: (b, h, qi, 0))
    ctx_shape = jax.ShapeDtypeStruct((B, H, Lq, Dv), out_dtype)
    if return_attn:
        out_specs = [
            ctx_spec,
            pl.BlockSpec((None, None, tq, Lk), lambda b, h, qi: (b, h, qi, 0)),
        ]
        out_shape = (ctx_shape, jax.ShapeDtypeStruct((B, H, Lq, Lk), attn_dtype))
    else:
        out_specs = ctx_spec
        out_shape = ctx_shape

    # Advisory cost estimate so XLA overlaps surrounding ops (QKV projections).
    flops = 2 * B * H * Lq * Lk * (Dk + Dv)
    transcendentals = B * H * Lq * Lk
    bytes_accessed = (
        Q.size * Q.dtype.itemsize
        + K.size * K.dtype.itemsize
        + V.size * V.dtype.itemsize
        + (attn_mask.size * attn_mask.dtype.itemsize if has_mask else 0)
        + B * H * Lq * Dv * jnp.dtype(out_dtype).itemsize
        + (B * H * Lq * Lk * jnp.dtype(attn_dtype).itemsize if return_attn else 0)
    )

    kernel = functools.partial(
        _sdpa_kernel,
        scale=1.0 / math.sqrt(dk),
        has_mask=has_mask,
        return_attn=return_attn,
    )

    outs = pl.pallas_call(
        kernel,
        grid_spec=pltpu.PrefetchScalarGridSpec(
            num_scalar_prefetch=0,
            grid=grid,
            in_specs=in_specs,
            out_specs=out_specs,
        ),
        out_shape=out_shape,
        compiler_params=pltpu.CompilerParams(
            dimension_semantics=("parallel", "parallel", "parallel"),
            vmem_limit_bytes=vmem_limit,
        ),
        cost_estimate=pl.CostEstimate(
            flops=flops,
            transcendentals=transcendentals,
            bytes_accessed=bytes_accessed,
        ),
    )(*operands)

    if return_attn:
        context, attn = outs
        return context, attn
    return outs


def _reference(Q, K, V, attn_mask, dk):
    scores = jnp.einsum("bhqd,bhkd->bhqk", Q, K) / math.sqrt(dk)
    if attn_mask is not None:
        scores = jnp.where(attn_mask, -1e9, scores)
    attn = jax.nn.softmax(scores, axis=-1)
    context = jnp.einsum("bhqk,bhkd->bhqd", attn, V)
    return context, attn


if __name__ == "__main__":
    # Small shapes consistent with the module's forward signature.
    B, H, Lq, Lk, DK = 2, 4, 8, 8, 32

    key = jax.random.PRNGKey(0)
    kq, kk, kv, km, km2 = jax.random.split(key, 5)
    Q = jax.random.normal(kq, (B, H, Lq, DK), dtype=jnp.float32)
    K = jax.random.normal(kk, (B, H, Lk, DK), dtype=jnp.float32)
    V = jax.random.normal(kv, (B, H, Lk, DK), dtype=jnp.float32)

    # 1) Full boolean mask [B, H, Lq, Lk] (module's documented signature);
    #    fed straight to the kernel, no wrapper-side dtype conversion.
    attn_mask = jax.random.bernoulli(km, p=0.25, shape=(B, H, Lq, Lk))
    context, attn = scaled_dot_product_attention(Q, K, V, attn_mask, dk=DK)
    jax.block_until_ready((context, attn))
    ref_ctx, ref_attn = _reference(Q, K, V, attn_mask, DK)
    assert context.shape == (B, H, Lq, DK)
    assert attn.shape == (B, H, Lq, Lk)
    assert jnp.allclose(context, ref_ctx, atol=1e-5, rtol=1e-5)
    assert jnp.allclose(attn, ref_attn, atol=1e-5, rtol=1e-5)

    # 2) Broadcast key-padding mask [B, 1, 1, Lk]: broadcast happens in the
    #    BlockSpec index_map, never materialized to [B, H, Lq, Lk].
    pad_mask = jax.random.bernoulli(km2, p=0.25, shape=(B, 1, 1, Lk))
    ctx2, attn2 = scaled_dot_product_attention(Q, K, V, pad_mask, dk=DK)
    jax.block_until_ready((ctx2, attn2))
    ref_ctx2, ref_attn2 = _reference(Q, K, V, jnp.broadcast_to(pad_mask, (B, H, Lq, Lk)), DK)
    assert jnp.allclose(ctx2, ref_ctx2, atol=1e-5, rtol=1e-5)
    assert jnp.allclose(attn2, ref_attn2, atol=1e-5, rtol=1e-5)

    # 3) No mask + context-only fast path (drops the attn writeback entirely).
    ctx3 = scaled_dot_product_attention(Q, K, V, None, dk=DK, return_attn=False)
    jax.block_until_ready(ctx3)
    ref_ctx3, _ = _reference(Q, K, V, None, DK)
    assert jnp.allclose(ctx3, ref_ctx3, atol=1e-5, rtol=1e-5)

    print("KERNEL_OK")
</pallas_src>

<mosaic_0001>
module attributes {stable_mosaic.version = 11 : i64} {
  func.func @_sdpa_kernel(%arg0: i32, %arg1: i32, %arg2: i32, %arg3: memref<1x1x8x32xf32, #tpu.memory_space<vmem>>, %arg4: memref<1x1x8x32xf32, #tpu.memory_space<vmem>>, %arg5: memref<1x1x8x32xf32, #tpu.memory_space<vmem>>, %arg6: memref<1x1x8x8xi32, #tpu.memory_space<vmem>>, %arg7: memref<1x1x8x32xf32, #tpu.memory_space<vmem>>, %arg8: memref<1x1x8x8xf32, #tpu.memory_space<vmem>>) attributes {dimension_semantics = [#tpu.dimension_semantics<parallel>, #tpu.dimension_semantics<parallel>, #tpu.dimension_semantics<parallel>], iteration_bounds = array<i64: 2, 4, 1>, scalar_prefetch = 0 : i64, scratch_operands = 0 : i64, tpu.core_type = #tpu.core_type<tc>, window_params = [{transform_indices = @transform_0, window_bounds = array<i64: 1, 1, 8, 32>}, {transform_indices = @transform_1, window_bounds = array<i64: 1, 1, 8, 32>}, {transform_indices = @transform_2, window_bounds = array<i64: 1, 1, 8, 32>}, {transform_indices = @transform_3, window_bounds = array<i64: 1, 1, 8, 8>}, {transform_indices = @transform_4, window_bounds = array<i64: 1, 1, 8, 32>}, {transform_indices = @transform_5, window_bounds = array<i64: 1, 1, 8, 8>}]} {
    %c0 = arith.constant 0 : index
    %c0_0 = arith.constant 0 : index
    %c0_1 = arith.constant 0 : index
    %c0_2 = arith.constant 0 : index
    %0 = vector.load %arg3[%c0, %c0_0, %c0_1, %c0_2] : memref<1x1x8x32xf32, #tpu.memory_space<vmem>>, vector<1x1x8x32xf32>
    %1 = vector.shape_cast %0 : vector<1x1x8x32xf32> to vector<8x32xf32>
    %c0_3 = arith.constant 0 : index
    %c0_4 = arith.constant 0 : index
    %c0_5 = arith.constant 0 : index
    %c0_6 = arith.constant 0 : index
    %2 = vector.load %arg4[%c0_3, %c0_4, %c0_5, %c0_6] : memref<1x1x8x32xf32, #tpu.memory_space<vmem>>, vector<1x1x8x32xf32>
    %3 = vector.shape_cast %2 : vector<1x1x8x32xf32> to vector<8x32xf32>
    %c0_7 = arith.constant 0 : index
    %c0_8 = arith.constant 0 : index
    %c0_9 = arith.constant 0 : index
    %c0_10 = arith.constant 0 : index
    %4 = vector.load %arg5[%c0_7, %c0_8, %c0_9, %c0_10] : memref<1x1x8x32xf32, #tpu.memory_space<vmem>>, vector<1x1x8x32xf32>
    %5 = vector.shape_cast %4 : vector<1x1x8x32xf32> to vector<8x32xf32>
    %cst = arith.constant 0.176776692 : f32
    %6 = vector.broadcast %cst : f32 to vector<8x32xf32>
    %7 = arith.mulf %1, %6 : vector<8x32xf32>
    %cst_11 = arith.constant dense<0.000000e+00> : vector<8x8xf32>
    %8 = tpu.matmul %7, %3, %cst_11 {dimension_numbers = #tpu.dot_dimension_numbers<[1], [1], [0], [0], [0, 0, 1, 0], [], []>} : vector<8x32xf32>, vector<8x32xf32>, vector<8x8xf32> -> vector<8x8xf32>
    %c0_12 = arith.constant 0 : index
    %c0_13 = arith.constant 0 : index
    %c0_14 = arith.constant 0 : index
    %c0_15 = arith.constant 0 : index
    %9 = vector.load %arg6[%c0_12, %c0_13, %c0_14, %c0_15] : memref<1x1x8x8xi32, #tpu.memory_space<vmem>>, vector<1x1x8x8xi32>
    %10 = vector.shape_cast %9 : vector<1x1x8x8xi32> to vector<8x8xi32>
    %cst_16 = arith.constant dense<0> : vector<8x8xi32>
    %11 = arith.cmpi ne, %10, %cst_16 : vector<8x8xi32>
    %cst_17 = arith.constant -1.000000e+09 : f32
    %12 = vector.broadcast %cst_17 : f32 to vector<8x8xf32>
    %13 = arith.select %11, %12, %8 : vector<8x8xi1>, vector<8x8xf32>
    %cst_18 = arith.constant dense<0xFF800000> : vector<8xf32>
    %14 = vector.multi_reduction <maximumf>, %13, %cst_18 [1] : vector<8x8xf32> to vector<8xf32>
    %15 = vector.shape_cast %14 : vector<8xf32> to vector<8x1xf32>
    %16 = vector.broadcast %15 : vector<8x1xf32> to vector<8x8xf32>
    %17 = arith.subf %13, %16 : vector<8x8xf32>
    %18 = math.exp %17 : vector<8x8xf32>
    %cst_19 = arith.constant dense<0.000000e+00> : vector<8xf32>
    %19 = vector.multi_reduction <add>, %18, %cst_19 [1] : vector<8x8xf32> to vector<8xf32>
    %20 = vector.shape_cast %19 : vector<8xf32> to vector<8x1xf32>
    %21 = tpu.reciprocal %20 : vector<8x1xf32> -> vector<8x1xf32>
    %22 = vector.broadcast %21 : vector<8x1xf32> to vector<8x8xf32>
    %23 = arith.mulf %18, %22 : vector<8x8xf32>
    %cst_20 = arith.constant dense<0.000000e+00> : vector<8x32xf32>
    %24 = tpu.matmul %23, %5, %cst_20 {dimension_numbers = #tpu.dot_dimension_numbers<[1], [0], [0], [1], [0, 0, 1, 1], [], []>} : vector<8x8xf32>, vector<8x32xf32>, vector<8x32xf32> -> vector<8x32xf32>
    %c0_21 = arith.constant 0 : index
    %c0_22 = arith.constant 0 : index
    %c0_23 = arith.constant 0 : index
    %c0_24 = arith.constant 0 : index
    %25 = vector.load %arg7[%c0_21, %c0_22, %c0_23, %c0_24] : memref<1x1x8x32xf32, #tpu.memory_space<vmem>>, vector<1x1x8x32xf32>
    %26 = vector.shape_cast %25 : vector<1x1x8x32xf32> to vector<8x32xf32>
    %27 = vector.shape_cast %24 : vector<8x32xf32> to vector<1x1x8x32xf32>
    tpu.vector_store %arg7[%c0_21, %c0_22, %c0_23, %c0_24], %27 {strides = array<i32>} : memref<1x1x8x32xf32, #tpu.memory_space<vmem>>, vector<1x1x8x32xf32>,
    %c0_25 = arith.constant 0 : index
    %c0_26 = arith.constant 0 : index
    %c0_27 = arith.constant 0 : index
    %c0_28 = arith.constant 0 : index
    %28 = vector.load %arg8[%c0_25, %c0_26, %c0_27, %c0_28] : memref<1x1x8x8xf32, #tpu.memory_space<vmem>>, vector<1x1x8x8xf32>
    %29 = vector.shape_cast %28 : vector<1x1x8x8xf32> to vector<8x8xf32>
    %30 = vector.shape_cast %23 : vector<8x8xf32> to vector<1x1x8x8xf32>
    tpu.vector_store %arg8[%c0_25, %c0_26, %c0_27, %c0_28], %30 {strides = array<i32>} : memref<1x1x8x8xf32, #tpu.memory_space<vmem>>, vector<1x1x8x8xf32>,
    return
  }
  func.func @transform_0(%arg0: i32, %arg1: i32, %arg2: i32) -> (i32, i32, i32, i32) {
    %c0_i32 = arith.constant 0 : i32
    %c0_i32_0 = arith.constant 0 : i32
    return %arg0, %arg1, %arg2, %c0_i32 : i32, i32, i32, i32
  }
  func.func @transform_1(%arg0: i32, %arg1: i32, %arg2: i32) -> (i32, i32, i32, i32) {
    %c0_i32 = arith.constant 0 : i32
    %c0_i32_0 = arith.constant 0 : i32
    %c0_i32_1 = arith.constant 0 : i32
    return %arg0, %arg1, %c0_i32, %c0_i32_0 : i32, i32, i32, i32
  }
  func.func @transform_2(%arg0: i32, %arg1: i32, %arg2: i32) -> (i32, i32, i32, i32) {
    %c0_i32 = arith.constant 0 : i32
    %c0_i32_0 = arith.constant 0 : i32
    %c0_i32_1 = arith.constant 0 : i32
    return %arg0, %arg1, %c0_i32, %c0_i32_0 : i32, i32, i32, i32
  }
  func.func @transform_3(%arg0: i32, %arg1: i32, %arg2: i32) -> (i32, i32, i32, i32) {
    %c0_i32 = arith.constant 0 : i32
    %c0_i32_0 = arith.constant 0 : i32
    return %arg0, %arg1, %arg2, %c0_i32 : i32, i32, i32, i32
  }
  func.func @transform_4(%arg0: i32, %arg1: i32, %arg2: i32) -> (i32, i32, i32, i32) {
    %c0_i32 = arith.constant 0 : i32
    %c0_i32_0 = arith.constant 0 : i32
    return %arg0, %arg1, %arg2, %c0_i32 : i32, i32, i32, i32
  }
  func.func @transform_5(%arg0: i32, %arg1: i32, %arg2: i32) -> (i32, i32, i32, i32) {
    %c0_i32 = arith.constant 0 : i32
    %c0_i32_0 = arith.constant 0 : i32
    return %arg0, %arg1, %arg2, %c0_i32 : i32, i32, i32, i32
  }
}

</mosaic_0001>

<llo_original>
// kernel: tpu_custom_call.1
$region0: #{tpu_custom_call.1}
  #allocation0 [shape = 'u32[]', space=smem, size = 0x4, offset = 0x4, fixed_abs, tag = 'smem constant byte address 0x4 - core index']
  #allocation1 [shape = 'u32[144,128]{1,0:T(1,128)}', space=vmem, size = 0x12000, scoped, tag = 'internal scratch']
  %s0 = inlined_call_operand.vmem [shape: f32[2,4,8,32], index: 0, kind: input, shape index: {}]
  %s1 = inlined_call_operand.hbm [shape: f32[2,4,8,32], index: 1, kind: input, shape index: {}]
  %s2 = inlined_call_operand.hbm [shape: f32[2,4,8,32], index: 2, kind: input, shape index: {}]
  %s3 = inlined_call_operand.vmem [shape: s32[2,4,8,8], index: 3, kind: input, shape index: {}]
  %s4 = inlined_call_operand.hbm [shape: f32[2,4,8,32], index: 4, kind: output, shape index: {0}]
  %s5 = inlined_call_operand.hbm [shape: f32[2,4,8,8], index: 5, kind: output, shape index: {1}]
  %6 = xla_tuple %s4, %s5
  %s7 = sld [smem:[#allocation0]]
  $region65: #{tpu_custom_call.1} parent=0
    _
  %s9 = ssub.s32 1, %s7
  %s10 = scalar_select 0, %s9, %s7
  $region1: #{tpu_custom_call.1} parent=0
    #allocation2 [shape = 'u8[8192]{0}', space=vmem, size = 0x2000, scoped, tag = 'input window, operand 1']
    #allocation3 [shape = 's32[2]{0}', space=sflag, size = 0x8, scoped, tag = 'scoped memory for tpu_custom_call.1']
    #allocation4 [shape = 's32[2]{0}', space=sflag, size = 0x8, scoped, tag = 'scoped memory for tpu_custom_call.1']
    #allocation5 [shape = 'u8[8192]{0}', space=vmem, size = 0x2000, scoped, tag = 'input window, operand 2']
    #allocation6 [shape = 's32[2]{0}', space=sflag, size = 0x8, scoped, tag = 'scoped memory for tpu_custom_call.1']
    #allocation7 [shape = 'u8[8192]{0}', space=vmem, size = 0x2000, scoped, tag = 'output window, operand 0']
    #allocation8 [shape = 'u8[8192]{0}', space=vmem, size = 0x2000, scoped, tag = 'output window, operand 1']
    #allocation9 [shape = 's32[2]{0}', space=sflag, size = 0x8, scoped, tag = 'scoped memory for tpu_custom_call.1']
    %11 = vsyncpa [#allocation3], 0
    %s12 = scalar_lea.sflag [#allocation3], 1
    %13 = vsyncpa %s12, 0
    %14 = vsyncpa [#allocation6], 0
    %s15 = scalar_lea.sflag [#allocation6], 1
    %16 = vsyncpa %s15, 0
    %17 = vsyncpa [#allocation4], 0
    %s18 = scalar_lea.sflag [#allocation4], 1
    %19 = vsyncpa %s18, 0
    %20 = vsyncpa [#allocation9], 0
    %s21 = scalar_lea.sflag [#allocation9], 1
    %22 = vsyncpa %s21, 0
    loop: start=0, step=1, limit=10
    $region2: #{tpu_custom_call.1} parent=1 // loop_pre_header
      _
    $region3: #{tpu_custom_call.1} parent=1 // loop_header
      %s24 = sphi 0, %s28
      %p25 = scmp.ge.s32.totalorder %s24, 10
      %s31 = sphi 0, %s50
      %s32 = sphi 0, %s46
      %s33 = sphi 0, %s42
      %s34 = sphi 0, %s31
      %s35 = sphi 0, %s32
      %s36 = sphi 0, %s33
      %s37 = sphi 0, %s34
      %s38 = sphi 0, %s35
      %s39 = sphi 0, %s36
      %s57 = sphi 0, %s59
      %s60 = sphi 0, %s57
      %s61 = sphi 0, %s60
      %s77 = sphi 0, %s61
      %s85 = sphi 0, %s87
      %s88 = sphi 0, %s85
      %s89 = sphi 0, %s88
      %s105 = sphi 0, %s89
      %s113 = sphi 0, %s115
      %s116 = sphi 0, %s113
      %s117 = sphi 0, %s116
      %s133 = sphi 0, %s117
      %s143 = sphi 0, %s145
      %s146 = sphi 0, %s143
      %s147 = sphi 0, %s146
      %s163 = sphi 0, %s147
      %s173 = sphi 0, %s175
      %s176 = sphi 0, %s173
      %s177 = sphi 0, %s176
      %s193 = sphi 0, %s177
      %s203 = sphi 0, %s205
      %s206 = sphi 0, %s203
      %s207 = sphi 0, %s206
      %s223 = sphi 0, %s207
    $region4: #{tpu_custom_call.1} parent=1 // loop_header_branch
      %27 = sbr.rel (%p25) target = $region8
    $region5: #{tpu_custom_call.1} parent=1 // loop_body
      %s29 = ssub.s32 %s24, 1
      %s30 = ssub.s32 %s24, 2
      %s40 = sadd.s32 1, %s33
      %p41 = scmp.ge.s32.totalorder %s40, 1
      %s42 = scalar_select %p41, 0, %s40
      %s43 = sadd.s32 1, %s32
      %s44 = scalar_select %p41, %s43, %s32
      %p45 = scmp.ge.s32.totalorder %s44, 4
      %s46 = scalar_select %p45, 0, %s44
      %s47 = sadd.s32 1, %s31
      %s48 = scalar_select %p45, %s47, %s31
      %p49 = scmp.ge.s32.totalorder %s48, 2
      %s50 = scalar_select %p49, 0, %s48
      %s51 = ssub.s32 %s31, %s50
      %s52 = ssub.s32 %s32, %s46
      %s53 = sor.u32 %s51, %s52
      %s54 = ssub.s32 %s33, %s42
      %s55 = sor.u32 %s53, %s54
      %p56 = scmp.eq.s32.totalorder %s55, 0
      %s58 = sadd.s32 %s57, 1
      %s59 = scalar_select %p56, %s57, %s58
      %p62 = pneg %p56
      %p63 = scmp.eq.s32.totalorder %s24, 7
      %p64 = por %p62, %p63
      %p65 = scmp.ne.s32.totalorder %s57, %s60
      %p66 = scmp.eq.s32.totalorder %s24, 0
      %p67 = por %p65, %p66
      %p68 = scmp.ne.s32.totalorder %s57, %s60
      %p69 = scmp.eq.s32.totalorder %s29, 7
      %p70 = por %p68, %p69
      %p71 = scmp.ne.s32.totalorder %s60, %s61
      %p72 = scmp.eq.s32.totalorder %s29, 0
      %p73 = por %p71, %p72
      %p74 = scmp.ne.s32.totalorder %s60, %s61
      %p75 = scmp.eq.s32.totalorder %s30, 7
      %p76 = por %p74, %p75
      %p78 = scmp.ne.s32.totalorder %s61, %s77
      %p79 = scmp.eq.s32.totalorder %s30, 0
      %p80 = por %p78, %p79
      %s81 = ssub.s32 %s31, %s50
      %s82 = ssub.s32 %s32, %s46
      %s83 = sor.u32 %s81, %s82
      %p84 = scmp.eq.s32.totalorder %s83, 0
      %s86 = sadd.s32 %s85, 1
      %s87 = scalar_select %p84, %s85, %s86
      %p90 = pneg %p84
      %p91 = scmp.eq.s32.totalorder %s24, 7
      %p92 = por %p90, %p91
      %p93 = scmp.ne.s32.totalorder %s85, %s88
      %p94 = scmp.eq.s32.totalorder %s24, 0
      %p95 = por %p93, %p94
      %p96 = scmp.ne.s32.totalorder %s85, %s88
      %p97 = scmp.eq.s32.totalorder %s29, 7
      %p98 = por %p96, %p97
      %p99 = scmp.ne.s32.totalorder %s88, %s89
      %p100 = scmp.eq.s32.totalorder %s29, 0
      %p101 = por %p99, %p100
      %p102 = scmp.ne.s32.totalorder %s88, %s89
      %p103 = scmp.eq.s32.totalorder %s30, 7
      %p104 = por %p102, %p103
      %p106 = scmp.ne.s32.totalorder %s89, %s105
      %p107 = scmp.eq.s32.totalorder %s30, 0
      %p108 = por %p106, %p107
      %s109 = ssub.s32 %s31, %s50
      %s110 = ssub.s32 %s32, %s46
      %s111 = sor.u32 %s109, %s110
      %p112 = scmp.eq.s32.totalorder %s111, 0
      %s114 = sadd.s32 %s113, 1
      %s115 = scalar_select %p112, %s113, %s114
      %p118 = pneg %p112
      %p119 = scmp.eq.s32.totalorder %s24, 7
      %p120 = por %p118, %p119
      %p121 = scmp.ne.s32.totalorder %s113, %s116
      %p122 = scmp.eq.s32.totalorder %s24, 0
      %p123 = por %p121, %p122
      %p124 = scmp.ne.s32.totalorder %s113, %s116
      %p125 = scmp.eq.s32.totalorder %s29, 7
      %p126 = por %p124, %p125
      %p127 = scmp.ne.s32.totalorder %s116, %s117
      %p128 = scmp.eq.s32.totalorder %s29, 0
      %p129 = por %p127, %p128
      %p130 = scmp.ne.s32.totalorder %s116, %s117
      %p131 = scmp.eq.s32.totalorder %s30, 7
      %p132 = por %p130, %p131
      %p134 = scmp.ne.s32.totalorder %s117, %s133
      %p135 = scmp.eq.s32.totalorder %s30, 0
      %p136 = por %p134, %p135
      %s137 = ssub.s32 %s31, %s50
      %s138 = ssub.s32 %s32, %s46
      %s139 = sor.u32 %s137, %s138
      %s140 = ssub.s32 %s33, %s42
      %s141 = sor.u32 %s139, %s140
      %p142 = scmp.eq.s32.totalorder %s141, 0
      %s144 = sadd.s32 %s143, 1
      %s145 = scalar_select %p142, %s143, %s144
      %p148 = pneg %p142
      %p149 = scmp.eq.s32.totalorder %s24, 7
      %p150 = por %p148, %p149
      %p151 = scmp.ne.s32.totalorder %s143, %s146
      %p152 = scmp.eq.s32.totalorder %s24, 0
      %p153 = por %p151, %p152
      %p154 = scmp.ne.s32.totalorder %s143, %s146
      %p155 = scmp.eq.s32.totalorder %s29, 7
      %p156 = por %p154, %p155
      %p157 = scmp.ne.s32.totalorder %s146, %s147
      %p158 = scmp.eq.s32.totalorder %s29, 0
      %p159 = por %p157, %p158
      %p160 = scmp.ne.s32.totalorder %s146, %s147
      %p161 = scmp.eq.s32.totalorder %s30, 7
      %p162 = por %p160, %p161
      %p164 = scmp.ne.s32.totalorder %s147, %s163
      %p165 = scmp.eq.s32.totalorder %s30, 0
      %p166 = por %p164, %p165
      %s167 = ssub.s32 %s31, %s50
      %s168 = ssub.s32 %s32, %s46
      %s169 = sor.u32 %s167, %s168
      %s170 = ssub.s32 %s33, %s42
      %s171 = sor.u32 %s169, %s170
      %p172 = scmp.eq.s32.totalorder %s171, 0
      %s174 = sadd.s32 %s173, 1
      %s175 = scalar_select %p172, %s173, %s174
      %p178 = pneg %p172
      %p179 = scmp.eq.s32.totalorder %s24, 7
      %p180 = por %p178, %p179
      %p181 = scmp.ne.s32.totalorder %s173, %s176
      %p182 = scmp.eq.s32.totalorder %s24, 0
      %p183 = por %p181, %p182
      %p184 = scmp.ne.s32.totalorder %s173, %s176
      %p185 = scmp.eq.s32.totalorder %s29, 7
      %p186 = por %p184, %p185
      %p187 = scmp.ne.s32.totalorder %s176, %s177
      %p188 = scmp.eq.s32.totalorder %s29, 0
      %p189 = por %p187, %p188
      %p190 = scmp.ne.s32.totalorder %s176, %s177
      %p191 = scmp.eq.s32.totalorder %s30, 7
      %p192 = por %p190, %p191
      %p194 = scmp.ne.s32.totalorder %s177, %s193
      %p195 = scmp.eq.s32.totalorder %s30, 0
      %p196 = por %p194, %p195
      %s197 = ssub.s32 %s31, %s50
      %s198 = ssub.s32 %s32, %s46
      %s199 = sor.u32 %s197, %s198
      %s200 = ssub.s32 %s33, %s42
      %s201 = sor.u32 %s199, %s200
      %p202 = scmp.eq.s32.totalorder %s201, 0
      %s204 = sadd.s32 %s203, 1
      %s205 = scalar_select %p202, %s203, %s204
      %p208 = pneg %p202
      %p209 = scmp.eq.s32.totalorder %s24, 7
      %p210 = por %p208, %p209
      %p211 = scmp.ne.s32.totalorder %s203, %s206
      %p212 = scmp.eq.s32.totalorder %s24, 0
      %p213 = por %p211, %p212
      %p214 = scmp.ne.s32.totalorder %s203, %s206
      %p215 = scmp.eq.s32.totalorder %s29, 7
      %p216 = por %p214, %p215
      %p217 = scmp.ne.s32.totalorder %s206, %s207
      %p218 = scmp.eq.s32.totalorder %s29, 0
      %p219 = por %p217, %p218
      %p220 = scmp.ne.s32.totalorder %s206, %s207
      %p221 = scmp.eq.s32.totalorder %s30, 7
      %p222 = por %p220, %p221
      %p224 = scmp.ne.s32.totalorder %s207, %s223
      %p225 = scmp.eq.s32.totalorder %s30, 0
      %p226 = por %p224, %p225
      %p227 = scmp.le.s32.totalorder 1, %s24
      %p228 = scmp.lt.s32.totalorder %s24, 9
      %p229 = pnand %p227, %p228
      %p230 = pneg %p229
      // Predicated region
      $region9: #{tpu_custom_call.1} parent=5 // pred_check
        _
      $region10: #{tpu_custom_call.1} parent=5 // pred_check_branch
        %232 = sbr.rel (%p229) target = $region12
      $region11: #{tpu_custom_call.1} parent=5 // pred_region
        %s233 = ssub.s32 %s24, 1
      $region12: #{tpu_custom_call.1} parent=5 // pred_fallthru
        _
      %p234 = scmp.lt.s32.totalorder %s24, 8
      // Predicated region
      $region13: #{tpu_custom_call.1} parent=5 // pred_check
        %p235 = pneg %p234
      $region14: #{tpu_custom_call.1} parent=5 // pred_check_branch
        %237 = sbr.rel (%p235) target = $region16
      $region15: #{tpu_custom_call.1} parent=5 // pred_region
        // Predicated region
        $region17: #{tpu_custom_call.1} parent=15 // pred_check
          %p238 = pneg %p67
        $region18: #{tpu_custom_call.1} parent=15 // pred_check_branch
          %240 = sbr.rel (%p238) target = $region20
        $region19: #{tpu_custom_call.1} parent=15 // pred_region
          %p241 = scmp.lt.s32.totalorder %s31, 1
          %s242 = scalar_select %p241, %s31, 1
          %p243 = scmp.lt.s32.totalorder %s32, 3
          %s244 = scalar_select %p243, %s32, 3
          %p245 = scmp.lt.s32.totalorder %s33, 0
          %s246 = scalar_select %p245, %s33, 0
          %s247 = sadd.s32 %s246, %s244
          %s248 = smul.addr %s242, 4
          %s249 = sadd.s32 %s247, %s248
          %s250 = smul.addr %s249, 8
          %s251 = scalar_lea.vmem %s0, %s250
        $region20: #{tpu_custom_call.1} parent=15 // pred_fallthru
          _
        // Predicated region
        $region21: #{tpu_custom_call.1} parent=15 // pred_check
          %p252 = pneg %p95
        $region22: #{tpu_custom_call.1} parent=15 // pred_check_branch
          %254 = sbr.rel (%p252) target = $region24
        $region23: #{tpu_custom_call.1} parent=15 // pred_region
          %s255 = sand.u32 %s85, 1
          %s256 = scalar_lea.sflag [#allocation3], %s255
          %s257 = sand.u32 %s85, 1
          %s258 = smul.addr %s257, 8
          %s259 = scalar_lea.vmem [#allocation2], %s258
          %s261 = ssub.s32 128, 128
          %262 = vsyncadd %s256, %s261
          %s263 = smul.addr %s31, 4
          %s264 = sadd.s32 %s32, %s263
          %s265 = smul.addr %s264, 128
          %s266 = scalar_lea.hbm %s1, %s265
          %s268 = sshll.u32 %s259, 4
          %s269 = int_to_ptr.vmem [resolvable:$true] %s268
          %271 = dma.hbm_to_vmem [thread:$0]  %s266, 128, %s269, %s256
        $region24: #{tpu_custom_call.1} parent=15 // pred_fallthru
          _
        // Predicated region
        $region25: #{tpu_custom_call.1} parent=15 // pred_check
          %p272 = pneg %p123
        $region26: #{tpu_custom_call.1} parent=15 // pred_check_branch
          %274 = sbr.rel (%p272) target = $region28
        $region27: #{tpu_custom_call.1} parent=15 // pred_region
          %s275 = sand.u32 %s113, 1
          %s276 = scalar_lea.sflag [#allocation6], %s275
          %s277 = sand.u32 %s113, 1
          %s278 = smul.addr %s277, 8
          %s279 = scalar_lea.vmem [#allocation5], %s278
          %s281 = ssub.s32 128, 128
          %282 = vsyncadd %s276, %s281
          %s283 = smul.addr %s31, 4
          %s284 = sadd.s32 %s32, %s283
          %s285 = smul.addr %s284, 128
          %s286 = scalar_lea.hbm %s2, %s285
          %s288 = sshll.u32 %s279, 4
          %s289 = int_to_ptr.vmem [resolvable:$true] %s288
          %291 = dma.hbm_to_vmem [thread:$0]  %s286, 128, %s289, %s276
        $region28: #{tpu_custom_call.1} parent=15 // pred_fallthru
          _
        // Predicated region
        $region29: #{tpu_custom_call.1} parent=15 // pred_check
          %p292 = pneg %p153
        $region30: #{tpu_custom_call.1} parent=15 // pred_check_branch
          %294 = sbr.rel (%p292) target = $region32
        $region31: #{tpu_custom_call.1} parent=15 // pred_region
          %p295 = scmp.lt.s32.totalorder %s31, 1
          %s296 = scalar_select %p295, %s31, 1
          %p297 = scmp.lt.s32.totalorder %s32, 3
          %s298 = scalar_select %p297, %s32, 3
          %p299 = scmp.lt.s32.totalorder %s33, 0
          %s300 = scalar_select %p299, %s33, 0
          %s301 = sadd.s32 %s300, %s298
          %s302 = smul.addr %s296, 4
          %s303 = sadd.s32 %s301, %s302
          %s304 = smul.addr %s303, 8
          %s305 = scalar_lea.vmem %s3, %s304
        $region32: #{tpu_custom_call.1} parent=15 // pred_fallthru
          _
      $region16: #{tpu_custom_call.1} parent=5 // pred_fallthru
        _
      %p306 = scmp.le.s32.totalorder 1, %s24
      %p307 = scmp.lt.s32.totalorder %s24, 9
      %p308 = pnand %p306, %p307
      %p309 = pneg %p308
      // Predicated region
      $region33: #{tpu_custom_call.1} parent=5 // pred_check
        _
      $region34: #{tpu_custom_call.1} parent=5 // pred_check_branch
        %311 = sbr.rel (%p308) target = $region36
      $region35: #{tpu_custom_call.1} parent=5 // pred_region
        %s312 = ssub.s32 %s24, 1
        %s313 = sand.u32 %s88, 1
        %s314 = scalar_lea.sflag [#allocation3], %s313
        %s315 = sand.u32 %s88, 1
        %s316 = smul.addr %s315, 8
        %s317 = scalar_lea.vmem [#allocation2], %s316
        // Predicated region
        $region37: #{tpu_custom_call.1} parent=35 // pred_check
          %p318 = pneg %p101
        $region38: #{tpu_custom_call.1} parent=35 // pred_check_branch
          %320 = sbr.rel (%p318) target = $region40
        $region39: #{tpu_custom_call.1} parent=35 // pred_region
          %321 = dma.done %s314, 128
        $region40: #{tpu_custom_call.1} parent=35 // pred_fallthru
          _
        %s322 = sand.u32 %s116, 1
        %s323 = scalar_lea.sflag [#allocation6], %s322
        %s324 = sand.u32 %s116, 1
        %s325 = smul.addr %s324, 8
        %s326 = scalar_lea.vmem [#allocation5], %s325
        // Predicated region
        $region41: #{tpu_custom_call.1} parent=35 // pred_check
          %p327 = pneg %p129
        $region42: #{tpu_custom_call.1} parent=35 // pred_check_branch
          %329 = sbr.rel (%p327) target = $region44
        $region43: #{tpu_custom_call.1} parent=35 // pred_region
          %330 = dma.done %s323, 128
        $region44: #{tpu_custom_call.1} parent=35 // pred_fallthru
          _
        %p331 = scmp.lt.s32.totalorder %s34, 1
        %s332 = scalar_select %p331, %s34, 1
        %p333 = scmp.lt.s32.totalorder %s35, 3
        %s334 = scalar_select %p333, %s35, 3
        %p335 = scmp.lt.s32.totalorder %s36, 0
        %s336 = scalar_select %p335, %s36, 0
        %s337 = sadd.s32 %s336, %s334
        %s338 = smul.addr %s332, 4
        %s339 = sadd.s32 %s337, %s338
        %s340 = smul.addr %s339, 8
        %s341 = scalar_lea.vmem %s0, %s340
        %p342 = pneg %p73
        %p343 = pneg %p70
        %s344 = sand.u32 %s88, 1
        %s345 = scalar_lea.sflag [#allocation3], %s344
        %s346 = sand.u32 %s88, 1
        %s347 = smul.addr %s346, 8
        %s348 = scalar_lea.vmem [#allocation2], %s347
        %p349 = pneg %p101
        %p350 = pneg %p98
        %s351 = sand.u32 %s116, 1
        %s352 = scalar_lea.sflag [#allocation6], %s351
        %s353 = sand.u32 %s116, 1
        %s354 = smul.addr %s353, 8
        %s355 = scalar_lea.vmem [#allocation5], %s354
        %p356 = pneg %p129
        %p357 = pneg %p126
        %p358 = scmp.lt.s32.totalorder %s34, 1
        %s359 = scalar_select %p358, %s34, 1
        %p360 = scmp.lt.s32.totalorder %s35, 3
        %s361 = scalar_select %p360, %s35, 3
        %p362 = scmp.lt.s32.totalorder %s36, 0
        %s363 = scalar_select %p362, %s36, 0
        %s364 = sadd.s32 %s363, %s361
        %s365 = smul.addr %s359, 4
        %s366 = sadd.s32 %s364, %s365
        %s367 = smul.addr %s366, 8
        %s368 = scalar_lea.vmem %s3, %s367
        %p369 = pneg %p159
        %p370 = pneg %p156
        %p371 = pneg %p189
        %p372 = pneg %p186
        %s373 = sand.u32 %s176, 1
        %s374 = scalar_lea.sflag [#allocation4], %s373
        %s375 = sand.u32 %s176, 1
        %s376 = smul.addr %s375, 8
        %s377 = scalar_lea.vmem [#allocation7], %s376
        %p378 = pneg %p219
        %p379 = pneg %p216
        %s380 = sand.u32 %s206, 1
        %s381 = scalar_lea.sflag [#allocation9], %s380
        %s382 = sand.u32 %s206, 1
        %s383 = smul.addr %s382, 8
        %s384 = scalar_lea.vmem [#allocation8], %s383
        %p385 = scmp.lt.s32.totalorder %s34, 1
        %s386 = scalar_select %p385, %s34, 1
        %p387 = scmp.lt.s32.totalorder %s35, 3
        %s388 = scalar_select %p387, %s35, 3
        %p389 = scmp.lt.s32.totalorder %s36, 0
        %s390 = scalar_select %p389, %s36, 0
        %s391 = sadd.s32 %s390, %s388
        %s392 = smul.addr %s386, 4
        %s393 = sadd.s32 %s391, %s392
        %s394 = smul.addr %s393, 8
        %s395 = scalar_lea.vmem %s0, %s394
        %p396 = scmp.lt.s32.totalorder %s34, 1
        %s397 = scalar_select %p396, %s34, 1
        %p398 = scmp.lt.s32.totalorder %s35, 3
        %s399 = scalar_select %p398, %s35, 3
        %p400 = scmp.lt.s32.totalorder %s36, 0
        %s401 = scalar_select %p400, %s36, 0
        %s402 = sadd.s32 %s401, %s399
        %s403 = smul.addr %s397, 4
        %s404 = sadd.s32 %s402, %s403
        %s405 = smul.addr %s404, 8
        %s406 = scalar_lea.vmem %s3, %s405
        %v407 = vld [vmem:[%s395] sm:$0xff]
        %v408 = vld [vmem:[%s317] sm:$0xff]
        %v409 = vld [vmem:[%s326] sm:$0xff]
        %v410 = vmul.f32 %v407, 0.17677669
        %vm411 = vcmask 261120
        %v413 = vsel %vm411, %v410, 0
        %v416 = vsel %vm411, %v408, 0
        %418 = vmatprep.subr.mxu0 0.0
        %419 = vmatpush1.xpose.msra.mxu0 0.0
        %420 = vmatprep.subr.mxu0 0.0
        %421 = vmatpush1.xpose.msra.mxu0 0.0
        %422 = vmatprep.subr.mxu0 0.0
        %423 = vmatpush1.xpose.msra.mxu0 0.0
        %424 = vmatprep.subr.mxu0 0.0
        %425 = vmatpush1.xpose.msra.mxu0 0.0
        %426 = vmatprep.subr.mxu0 0.0
        %427 = vmatpush1.xpose.msra.mxu0 0.0
        %428 = vmatprep.subr.mxu0 0.0
        %429 = vmatpush1.xpose.msra.mxu0 0.0
        %430 = vmatprep.subr.mxu0 0.0
        %431 = vmatpush1.xpose.msra.mxu0 0.0
        %432 = vmatprep.subr.mxu0 0.0
        %433 = vmatpush1.xpose.msra.mxu0 0.0
        %434 = vmatprep.subr.mxu0 0.0
        %435 = vmatpush1.xpose.msra.mxu0 0.0
        %436 = vmatprep.subr.mxu0 0.0
        %437 = vmatpush1.xpose.msra.mxu0 0.0
        %438 = vmatprep.subr.mxu0 0.0
        %439 = vmatpush1.xpose.msra.mxu0 0.0
        %440 = vmatprep.subr.mxu0 0.0
        %441 = vmatpush1.xpose.msra.mxu0 0.0
        %442 = vmatprep.subr.mxu0 0.0
        %443 = vmatpush1.xpose.msra.mxu0 0.0
        %444 = vmatprep.subr.mxu0 0.0
        %445 = vmatpush1.xpose.msra.mxu0 0.0
        %446 = vmatprep.subr.mxu0 0.0
        %447 = vmatpush1.xpose.msra.mxu0 0.0
        %448 = vmatprep.subr.mxu0 0.0
        %449 = vmatpush1.xpose.msra.mxu0 %v416
        %450 = vmatprep.subr.mxu0 0.0
        %451 = vmatpush2.xpose.msra.mxu0 0.0
        %452 = vmatprep.subr.mxu0 0.0
        %453 = vmatpush2.xpose.msra.mxu0 0.0
        %454 = vmatprep.subr.mxu0 0.0
        %455 = vmatpush2.xpose.msra.mxu0 0.0
        %456 = vmatprep.subr.mxu0 0.0
        %457 = vmatpush2.xpose.msra.mxu0 0.0
        %458 = vmatprep.subr.mxu0 0.0
        %459 = vmatpush2.xpose.msra.mxu0 0.0
        %460 = vmatprep.subr.mxu0 0.0
        %461 = vmatpush2.xpose.msra.mxu0 0.0
        %462 = vmatprep.subr.mxu0 0.0
        %463 = vmatpush2.xpose.msra.mxu0 0.0
        %464 = vmatprep.subr.mxu0 0.0
        %465 = vmatpush2.xpose.msra.mxu0 0.0
        %466 = vmatprep.subr.mxu0 0.0
        %467 = vmatpush2.xpose.msra.mxu0 0.0
        %468 = vmatprep.subr.mxu0 0.0
        %469 = vmatpush2.xpose.msra.mxu0 0.0
        %470 = vmatprep.subr.mxu0 0.0
        %471 = vmatpush2.xpose.msra.mxu0 0.0
        %472 = vmatprep.subr.mxu0 0.0
        %473 = vmatpush2.xpose.msra.mxu0 0.0
        %474 = vmatprep.subr.mxu0 0.0
        %475 = vmatpush2.xpose.msra.mxu0 0.0
        %476 = vmatprep.subr.mxu0 0.0
        %477 = vmatpush2.xpose.msra.mxu0 0.0
        %478 = vmatprep.subr.mxu0 0.0
        %479 = vmatpush2.xpose.msra.mxu0 0.0
        %480 = vmatprep.subr.mxu0 0.0
        %481 = vmatpush2.xpose.msra.mxu0 0.0
        %482 = vmatprep.mubr.f32.mxu0 0.0
        %483 = vmatmul.mubr.f32.gmra.mxu0 %v413
        %v484 = vpop.f32.mrf.mxu0
        %v485 = vadd.f32 0.0, %v484
        %v486 = vpop.f32.mrf.mxu0
        %487 = vdwg.mxu0
        %v488 = vld [vmem:[%s406] sm:$0xff]
        %vm489 = vcmp.ne.s32.totalorder %v488, 0
        %v490 = vsel %vm489, -1e+09, %v485
        %vm491 = vcmask 64512
        %v492 = vsel %vm491, %v490, -inf
        %493 = vmax.xlane.f32.xlu0 %v492
        %v494 = vpop.xlane.xlu0 %493
        %v495 = vsub.f32 %v490, %v494
        %v496 = vmul.f32 %v495, 1.442695
        %v497 = vpow.pop %v496
        %v498 = vsel %vm491, %v497, 0.0
        %499 = vadd.xlane.f32.xlu0 %v498
        %v500 = vpop.xlane.xlu0 %499
        %v501 = vrcp.pop %v500
        %v502 = vmul.f32 %v497, %v501
        %v504 = vsel %vm491, %v502, 0
        %506 = vmatprep.subr.mxu0 0.0
        %507 = vmatpush1.msra.mxu0 0.0
        %508 = vmatprep.subr.mxu0 0.0
        %509 = vmatpush1.msra.mxu0 0.0
        %510 = vmatprep.subr.mxu0 0.0
        %511 = vmatpush1.msra.mxu0 0.0
        %512 = vmatprep.subr.mxu0 0.0
        %513 = vmatpush1.msra.mxu0 0.0
        %514 = vmatprep.subr.mxu0 0.0
        %515 = vmatpush1.msra.mxu0 0.0
        %516 = vmatprep.subr.mxu0 0.0
        %517 = vmatpush1.msra.mxu0 0.0
        %518 = vmatprep.subr.mxu0 0.0
        %519 = vmatpush1.msra.mxu0 0.0
        %520 = vmatprep.subr.mxu0 0.0
        %521 = vmatpush1.msra.mxu0 0.0
        %522 = vmatprep.subr.mxu0 0.0
        %523 = vmatpush1.msra.mxu0 0.0
        %524 = vmatprep.subr.mxu0 0.0
        %525 = vmatpush1.msra.mxu0 0.0
        %526 = vmatprep.subr.mxu0 0.0
        %527 = vmatpush1.msra.mxu0 0.0
        %528 = vmatprep.subr.mxu0 0.0
        %529 = vmatpush1.msra.mxu0 0.0
        %530 = vmatprep.subr.mxu0 0.0
        %531 = vmatpush1.msra.mxu0 0.0
        %532 = vmatprep.subr.mxu0 0.0
        %533 = vmatpush1.msra.mxu0 0.0
        %534 = vmatprep.subr.mxu0 0.0
        %535 = vmatpush1.msra.mxu0 0.0
        %536 = vmatprep.subr.mxu0 0.0
        %537 = vmatpush1.msra.mxu0 %v409
        %538 = vmatprep.subr.mxu0 0.0
        %539 = vmatpush2.msra.mxu0 0.0
        %540 = vmatprep.subr.mxu0 0.0
        %541 = vmatpush2.msra.mxu0 0.0
        %542 = vmatprep.subr.mxu0 0.0
        %543 = vmatpush2.msra.mxu0 0.0
        %544 = vmatprep.subr.mxu0 0.0
        %545 = vmatpush2.msra.mxu0 0.0
        %546 = vmatprep.subr.mxu0 0.0
        %547 = vmatpush2.msra.mxu0 0.0
        %548 = vmatprep.subr.mxu0 0.0
        %549 = vmatpush2.msra.mxu0 0.0
        %550 = vmatprep.subr.mxu0 0.0
        %551 = vmatpush2.msra.mxu0 0.0
        %552 = vmatprep.subr.mxu0 0.0
        %553 = vmatpush2.msra.mxu0 0.0
        %554 = vmatprep.subr.mxu0 0.0
        %555 = vmatpush2.msra.mxu0 0.0
        %556 = vmatprep.subr.mxu0 0.0
        %557 = vmatpush2.msra.mxu0 0.0
        %558 = vmatprep.subr.mxu0 0.0
        %559 = vmatpush2.msra.mxu0 0.0
        %560 = vmatprep.subr.mxu0 0.0
        %561 = vmatpush2.msra.mxu0 0.0
        %562 = vmatprep.subr.mxu0 0.0
        %563 = vmatpush2.msra.mxu0 0.0
        %564 = vmatprep.subr.mxu0 0.0
        %565 = vmatpush2.msra.mxu0 0.0
        %566 = vmatprep.subr.mxu0 0.0
        %567 = vmatpush2.msra.mxu0 0.0
        %568 = vmatprep.subr.mxu0 0.0
        %569 = vmatpush2.msra.mxu0 0.0
        %570 = vmatprep.mubr.f32.mxu0 0.0
        %571 = vmatmul.mubr.f32.gmra.mxu0 %v504
        %v572 = vpop.f32.mrf.mxu0
        %v573 = vadd.f32 0.0, %v572
        %v574 = vpop.f32.mrf.mxu0
        %575 = vdwg.mxu0
        %576 = vst.msk [vmem:[%s377] sm:$0xff] %vm411, %v573
        %577 = vst.msk [vmem:[%s384] sm:$0xff] %vm491, %v502
        %s578 = sand.u32 %s176, 1
        %s579 = scalar_lea.sflag [#allocation4], %s578
        %s580 = sand.u32 %s176, 1
        %s581 = smul.addr %s580, 8
        %s582 = scalar_lea.vmem [#allocation7], %s581
        %s583 = sand.u32 %s206, 1
        %s584 = scalar_lea.sflag [#allocation9], %s583
        %s585 = sand.u32 %s206, 1
        %s586 = smul.addr %s585, 8
        %s587 = scalar_lea.vmem [#allocation8], %s586
        // Predicated region
        $region45: #{tpu_custom_call.1} parent=35 // pred_check
          %p588 = pneg %p186
        $region46: #{tpu_custom_call.1} parent=35 // pred_check_branch
          %590 = sbr.rel (%p588) target = $region48
        $region47: #{tpu_custom_call.1} parent=35 // pred_region
          %s592 = ssub.s32 128, 128
          %593 = vsyncadd %s579, %s592
          %s594 = sadd.s32 %s36, %s35
          %s595 = smul.addr %s34, 4
          %s596 = sadd.s32 %s594, %s595
          %s597 = smul.addr %s596, 128
          %s598 = scalar_lea.hbm %s4, %s597
          %s600 = sshll.u32 %s582, 4
          %s601 = int_to_ptr.vmem [resolvable:$true] %s600
          %603 = dma.vmem_to_hbm [thread:$0]  %s601, 128, %s598, %s579
        $region48: #{tpu_custom_call.1} parent=35 // pred_fallthru
          _
        // Predicated region
        $region49: #{tpu_custom_call.1} parent=35 // pred_check
          %p604 = pneg %p216
        $region50: #{tpu_custom_call.1} parent=35 // pred_check_branch
          %606 = sbr.rel (%p604) target = $region52
        $region51: #{tpu_custom_call.1} parent=35 // pred_region
          %s608 = ssub.s32 128, 128
          %609 = vsyncadd %s584, %s608
          %s610 = sadd.s32 %s36, %s35
          %s611 = smul.addr %s34, 4
          %s612 = sadd.s32 %s610, %s611
          %s613 = smul.addr %s612, 128
          %s614 = scalar_lea.hbm %s5, %s613
          %s616 = sshll.u32 %s587, 4
          %s617 = int_to_ptr.vmem [resolvable:$true] %s616
          %619 = dma.vmem_to_hbm [thread:$0]  %s617, 128, %s614, %s584
        $region52: #{tpu_custom_call.1} parent=35 // pred_fallthru
          _
      $region36: #{tpu_custom_call.1} parent=5 // pred_fallthru
        _
      %p620 = scmp.le.s32.totalorder 2, %s24
      // Predicated region
      $region53: #{tpu_custom_call.1} parent=5 // pred_check
        %p621 = pneg %p620
      $region54: #{tpu_custom_call.1} parent=5 // pred_check_branch
        %623 = sbr.rel (%p621) target = $region56
      $region55: #{tpu_custom_call.1} parent=5 // pred_region
        %s624 = ssub.s32 %s24, 2
        // Predicated region
        $region57: #{tpu_custom_call.1} parent=55 // pred_check
          %p625 = pneg %p192
        $region58: #{tpu_custom_call.1} parent=55 // pred_check_branch
          %627 = sbr.rel (%p625) target = $region60
        $region59: #{tpu_custom_call.1} parent=55 // pred_region
          %s628 = sand.u32 %s177, 1
          %s629 = scalar_lea.sflag [#allocation4], %s628
          %s630 = sand.u32 %s177, 1
          %s631 = smul.addr %s630, 8
          %s632 = scalar_lea.vmem [#allocation7], %s631
          %633 = dma.done %s629, 128
        $region60: #{tpu_custom_call.1} parent=55 // pred_fallthru
          _
        // Predicated region
        $region61: #{tpu_custom_call.1} parent=55 // pred_check
          %p634 = pneg %p222
        $region62: #{tpu_custom_call.1} parent=55 // pred_check_branch
          %636 = sbr.rel (%p634) target = $region64
        $region63: #{tpu_custom_call.1} parent=55 // pred_region
          %s637 = sand.u32 %s207, 1
          %s638 = scalar_lea.sflag [#allocation9], %s637
          %s639 = sand.u32 %s207, 1
          %s640 = smul.addr %s639, 8
          %s641 = scalar_lea.vmem [#allocation8], %s640
          %642 = dma.done %s638, 128
        $region64: #{tpu_custom_call.1} parent=55 // pred_fallthru
          _
      $region56: #{tpu_custom_call.1} parent=5 // pred_fallthru
        _
    $region6: #{tpu_custom_call.1} parent=1 // loop_footer
      %s28 = sadd.s32 1, %s24
    $region7: #{tpu_custom_call.1} parent=1 // loop_footer_branch
      %23 = sbr.rel target = $region3
    $region8: #{tpu_custom_call.1} parent=1 // loop_exit
      _
    %643 = vsyncpa [#allocation3], 1
    %s644 = scalar_lea.sflag [#allocation3], 1
    %645 = vsyncpa %s644, 1
    %646 = vsyncpa [#allocation6], 1
    %s647 = scalar_lea.sflag [#allocation6], 1
    %648 = vsyncpa %s647, 1
    %649 = vsyncpa [#allocation4], 1
    %s650 = scalar_lea.sflag [#allocation4], 1
    %651 = vsyncpa %s650, 1
    %652 = vsyncpa [#allocation9], 1
    %s653 = scalar_lea.sflag [#allocation9], 1
    %654 = vsyncpa %s653, 1

</llo_original>
